<compile_context>
chip_gen: v6e
topology: v6e:2x2x1
jax: 0.10.0
libtpu: 0.0.40
codegen_flags: <defaults>
</compile_context>

<pallas_src>
import jax
import jax.numpy as jnp
from jax.experimental import pallas as pl
from jax.experimental.pallas import tpu as pltpu


def _round_up(n, m):
    return ((n + m - 1) // m) * m


def _choose_batch_tiling(B, max_tile_b):
    """Pick (tile_b, padded_b).

    Prefers a tile that divides the (sublane-padded) batch exactly so the
    wrapper never has to jnp.pad / slice, keeps >= 2 grid steps for large
    batches (v7x dual TensorCore), and keeps the tile a multiple of 8.
    """
    b8 = _round_up(max(int(B), 1), 8)          # minimal sublane padding
    cap = max(8, min(int(max_tile_b), b8))
    cap -= cap % 8
    # v7x has 2 TensorCores sharing the ("parallel",) grid: keep >= 2 steps
    # once the batch is large enough that splitting is worthwhile.
    if b8 >= 1024 and b8 < 2 * cap:
        cap = max(8, (b8 // 2) - (b8 // 2) % 8)
    # Largest tile <= cap (multiple of 8) that divides b8 -> zero extra pad.
    t = cap
    while t > 8:
        if b8 % t == 0:
            break
        t -= 8
    if t >= 128 or b8 <= 1024:
        return t, b8
    # Awkward batch (only a tiny divisor exists): pad to a multiple of 256
    # instead of running hundreds of tiny grid steps.
    tile = min(cap, 256)
    return tile, _round_up(b8, tile)


def mlp_kernel(x_ref, w1_ref, b1_ref, alpha_ref, w2_ref, b2_ref, o_ref):
    # First linear: (TILE_B, D_in) @ (D_in, 512) + (1, 512); f32 accumulation.
    x = x_ref[...].astype(w1_ref.dtype)
    h = jnp.dot(x, w1_ref[...], preferred_element_type=jnp.float32)
    h = h + b1_ref[...]

    # PReLU with a single shared parameter (PyTorch default num_parameters=1),
    # kept in f32 on the VPU.
    alpha = alpha_ref[0]
    h = jnp.where(h >= 0.0, h, alpha * h)

    # Second linear: (TILE_B, 512) @ (512, emb) + (1, emb); f32 accumulation.
    out = jnp.dot(h.astype(w2_ref.dtype), w2_ref[...],
                  preferred_element_type=jnp.float32)
    out = out + b2_ref[...]
    o_ref[...] = out.astype(o_ref.dtype)


def network_forward(x, w1, b1, alpha, w2, b2, *, max_tile_b=1024,
                    out_dtype=jnp.float32):
    B, D_in = x.shape
    H = w1.shape[1]
    E = w2.shape[1]

    tile_b, padded_b = _choose_batch_tiling(B, max_tile_b)
    if padded_b != B:
        # Only happens for batches that are not a multiple of 8 (or truly
        # awkward sizes); padded rows are zero-filled and sliced off below.
        x = jnp.pad(x, ((0, padded_b - B), (0, 0)))
    grid = (padded_b // tile_b,)

    out_isz = jnp.dtype(out_dtype).itemsize
    cost = pl.CostEstimate(
        flops=2 * padded_b * (D_in * H + H * E),
        transcendentals=0,
        bytes_accessed=(padded_b * D_in * x.dtype.itemsize      # x streamed
                        + D_in * H * jnp.dtype(w1.dtype).itemsize  # w1 once
                        + H * E * jnp.dtype(w2.dtype).itemsize     # w2 once
                        + (H + E) * 4                              # biases
                        + padded_b * E * out_isz),                 # out streamed
    )

    # VMEM budget: double-buffered x/out tiles + resident weights + f32 hidden
    # activation (with headroom).  Only raise the scoped limit when we exceed
    # the smallest per-chip default (16 MiB on v5e); stays under v7x's 64 MiB.
    vmem_est = (2 * tile_b * D_in * x.dtype.itemsize
                + 2 * tile_b * E * out_isz
                + D_in * H * jnp.dtype(w1.dtype).itemsize
                + H * E * jnp.dtype(w2.dtype).itemsize
                + (H + E) * 8
                + 4 * tile_b * H * 4)
    vmem_limit = (int(min(vmem_est * 2, 60 << 20))
                  if vmem_est > (14 << 20) else None)

    grid_spec = pltpu.PrefetchScalarGridSpec(
        num_scalar_prefetch=0,
        grid=grid,
        in_specs=[
            pl.BlockSpec((tile_b, D_in), lambda i: (i, 0)),       # x: streamed
            pl.BlockSpec((D_in, H), lambda i: (0, 0)),            # w1: resident
            pl.BlockSpec((1, H), lambda i: (0, 0)),               # b1: resident
            pl.BlockSpec(memory_space=pltpu.MemorySpace.SMEM),    # alpha scalar
            pl.BlockSpec((H, E), lambda i: (0, 0)),               # w2: resident
            pl.BlockSpec((1, E), lambda i: (0, 0)),               # b2: resident
        ],
        out_specs=pl.BlockSpec((tile_b, E), lambda i: (i, 0)),
    )

    out = pl.pallas_call(
        mlp_kernel,
        out_shape=jax.ShapeDtypeStruct((padded_b, E), out_dtype),
        grid_spec=grid_spec,
        compiler_params=pltpu.CompilerParams(
            dimension_semantics=("parallel",),   # v7x: shard tiles over 2 TCs
            vmem_limit_bytes=vmem_limit),
        cost_estimate=cost,
    )(x, w1, b1, alpha, w2, b2)

    return out[:B] if padded_b != B else out


def init_params(key, input_dim, hidden_dim=512, emb_dim=128,
                param_dtype=jnp.bfloat16):
    k1, k2, k3, k4 = jax.random.split(key, 4)
    # Roughly matches nn.Linear's uniform(-1/sqrt(fan_in), 1/sqrt(fan_in)) init.
    lim1 = 1.0 / jnp.sqrt(jnp.float32(input_dim))
    lim2 = 1.0 / jnp.sqrt(jnp.float32(hidden_dim))
    # Matmul weights are *stored* in the compute dtype so there is no per-call
    # wrapper cast; biases & alpha stay f32 (bias add + PReLU run on the VPU).
    w1 = jax.random.uniform(k1, (input_dim, hidden_dim), jnp.float32,
                            -lim1, lim1).astype(param_dtype)
    b1 = jax.random.uniform(k2, (1, hidden_dim), jnp.float32, -lim1, lim1)
    w2 = jax.random.uniform(k3, (hidden_dim, emb_dim), jnp.float32,
                            -lim2, lim2).astype(param_dtype)
    b2 = jax.random.uniform(k4, (1, emb_dim), jnp.float32, -lim2, lim2)
    alpha = jnp.array([0.25], dtype=jnp.float32)  # PyTorch PReLU default init
    return w1, b1, alpha, w2, b2


def _reference(x, w1, b1, alpha, w2, b2):
    # Matched-precision reference (weight-dtype matmul operands, f32 accum).
    h = jnp.dot(x.astype(w1.dtype), w1, preferred_element_type=jnp.float32) + b1
    h = jnp.where(h >= 0, h, alpha[0] * h)
    return jnp.dot(h.astype(w2.dtype), w2,
                   preferred_element_type=jnp.float32) + b2


if __name__ == "__main__":
    key = jax.random.PRNGKey(0)
    input_dim = 32
    emb_dim = 128

    kx, kx2, kp = jax.random.split(key, 3)
    w1, b1, alpha, w2, b2 = init_params(kp, input_dim, hidden_dim=512,
                                        emb_dim=emb_dim)

    # Case 1: batch already a multiple of 8 -> no pad / slice in the wrapper.
    x = jax.random.normal(kx, (8, input_dim), dtype=jnp.float32)
    out = network_forward(x, w1, b1, alpha, w2, b2)
    jax.block_until_ready(out)
    assert out.shape == (8, emb_dim) and out.dtype == jnp.float32
    ref = _reference(x, w1, b1, alpha, w2, b2)
    assert jnp.allclose(out, ref, atol=1e-3, rtol=1e-3), \
        float(jnp.max(jnp.abs(out - ref)))

    # Loose sanity vs full-f32 math (bf16 operand rounding only).
    w1f, w2f = w1.astype(jnp.float32), w2.astype(jnp.float32)
    h32 = x @ w1f + b1
    h32 = jnp.where(h32 >= 0, h32, alpha[0] * h32)
    ref32 = h32 @ w2f + b2
    assert jnp.allclose(out, ref32, atol=5e-2, rtol=5e-2)

    # Case 2: ragged batch (20 rows) -> exercises the pad-to-8 / slice path.
    x2 = jax.random.normal(kx2, (20, input_dim), dtype=jnp.float32)
    out2 = network_forward(x2, w1, b1, alpha, w2, b2)
    jax.block_until_ready(out2)
    assert out2.shape == (20, emb_dim)
    ref2 = _reference(x2, w1, b1, alpha, w2, b2)
    assert jnp.allclose(out2, ref2, atol=1e-3, rtol=1e-3), \
        float(jnp.max(jnp.abs(out2 - ref2)))

    print("KERNEL_OK")
</pallas_src>

<mosaic_0001>
module attributes {stable_mosaic.version = 11 : i64} {
  func.func @mlp_kernel(%arg0: i32, %arg1: memref<8x32xf32, #tpu.memory_space<vmem>>, %arg2: memref<32x512xbf16, #tpu.memory_space<vmem>>, %arg3: memref<1x512xf32, #tpu.memory_space<vmem>>, %arg4: memref<1xf32, #tpu.memory_space<smem>>, %arg5: memref<512x128xbf16, #tpu.memory_space<vmem>>, %arg6: memref<1x128xf32, #tpu.memory_space<vmem>>, %arg7: memref<8x128xf32, #tpu.memory_space<vmem>>) attributes {dimension_semantics = [#tpu.dimension_semantics<parallel>], iteration_bounds = array<i64: 1>, scalar_prefetch = 0 : i64, scratch_operands = 0 : i64, tpu.core_type = #tpu.core_type<tc>, window_params = [{transform_indices = @transform_0, window_bounds = array<i64: 8, 32>}, {pipeline_mode = #tpu.pipeline_mode<synchronous>, transform_indices = @transform_1, window_bounds = array<i64: 32, 512>}, {pipeline_mode = #tpu.pipeline_mode<synchronous>, transform_indices = @transform_2, window_bounds = array<i64: 1, 512>}, {transform_indices = @transform_3, window_bounds = array<i64: 1>}, {pipeline_mode = #tpu.pipeline_mode<synchronous>, transform_indices = @transform_4, window_bounds = array<i64: 512, 128>}, {pipeline_mode = #tpu.pipeline_mode<synchronous>, transform_indices = @transform_5, window_bounds = array<i64: 1, 128>}, {transform_indices = @transform_6, window_bounds = array<i64: 8, 128>}]} {
    %c0 = arith.constant 0 : index
    %c0_0 = arith.constant 0 : index
    %0 = vector.load %arg1[%c0, %c0_0] : memref<8x32xf32, #tpu.memory_space<vmem>>, vector<8x32xf32>
    %1 = arith.truncf %0 : vector<8x32xf32> to vector<8x32xbf16>
    %c0_1 = arith.constant 0 : index
    %c0_2 = arith.constant 0 : index
    %2 = vector.load %arg2[%c0_1, %c0_2] : memref<32x512xbf16, #tpu.memory_space<vmem>>, vector<32x512xbf16>
    %cst = arith.constant dense<0.000000e+00> : vector<8x512xf32>
    %3 = tpu.matmul %1, %2, %cst {dimension_numbers = #tpu.dot_dimension_numbers<[1], [0], [0], [1], [0, 0, 1, 1], [], []>} : vector<8x32xbf16>, vector<32x512xbf16>, vector<8x512xf32> -> vector<8x512xf32>
    %c0_3 = arith.constant 0 : index
    %c0_4 = arith.constant 0 : index
    %4 = vector.load %arg3[%c0_3, %c0_4] : memref<1x512xf32, #tpu.memory_space<vmem>>, vector<1x512xf32>
    %5 = vector.broadcast %4 : vector<1x512xf32> to vector<8x512xf32>
    %6 = arith.addf %3, %5 : vector<8x512xf32>
    %c0_5 = arith.constant 0 : index
    %7 = memref.load %arg4[%c0_5] : memref<1xf32, #tpu.memory_space<smem>>
    %cst_6 = arith.constant 0.000000e+00 : f32
    %8 = vector.broadcast %cst_6 : f32 to vector<8x512xf32>
    %9 = arith.cmpf oge, %6, %8 : vector<8x512xf32>
    %10 = vector.broadcast %7 : f32 to vector<8x512xf32>
    %11 = arith.mulf %10, %6 : vector<8x512xf32>
    %12 = arith.select %9, %6, %11 : vector<8x512xi1>, vector<8x512xf32>
    %13 = arith.truncf %12 : vector<8x512xf32> to vector<8x512xbf16>
    %c0_7 = arith.constant 0 : index
    %c0_8 = arith.constant 0 : index
    %14 = vector.load %arg5[%c0_7, %c0_8] : memref<512x128xbf16, #tpu.memory_space<vmem>>, vector<512x128xbf16>
    %cst_9 = arith.constant dense<0.000000e+00> : vector<8x128xf32>
    %15 = tpu.matmul %13, %14, %cst_9 {dimension_numbers = #tpu.dot_dimension_numbers<[1], [0], [0], [1], [0, 0, 1, 1], [], []>} : vector<8x512xbf16>, vector<512x128xbf16>, vector<8x128xf32> -> vector<8x128xf32>
    %c0_10 = arith.constant 0 : index
    %c0_11 = arith.constant 0 : index
    %16 = vector.load %arg6[%c0_10, %c0_11] : memref<1x128xf32, #tpu.memory_space<vmem>>, vector<1x128xf32>
    %17 = vector.broadcast %16 : vector<1x128xf32> to vector<8x128xf32>
    %18 = arith.addf %15, %17 : vector<8x128xf32>
    %c0_12 = arith.constant 0 : index
    %c0_13 = arith.constant 0 : index
    %19 = vector.load %arg7[%c0_12, %c0_13] : memref<8x128xf32, #tpu.memory_space<vmem>>, vector<8x128xf32>
    tpu.vector_store %arg7[%c0_12, %c0_13], %18 {strides = array<i32>} : memref<8x128xf32, #tpu.memory_space<vmem>>, vector<8x128xf32>,
    return
  }
  func.func @transform_0(%arg0: i32) -> (i32, i32) {
    %c0_i32 = arith.constant 0 : i32
    %c0_i32_0 = arith.constant 0 : i32
    return %arg0, %c0_i32 : i32, i32
  }
  func.func @transform_1(%arg0: i32) -> (i32, i32) {
    %c0_i32 = arith.constant 0 : i32
    %c0_i32_0 = arith.constant 0 : i32
    %c0_i32_1 = arith.constant 0 : i32
    return %c0_i32, %c0_i32_0 : i32, i32
  }
  func.func @transform_2(%arg0: i32) -> (i32, i32) {
    %c0_i32 = arith.constant 0 : i32
    %c0_i32_0 = arith.constant 0 : i32
    %c0_i32_1 = arith.constant 0 : i32
    return %c0_i32, %c0_i32_0 : i32, i32
  }
  func.func @transform_3(%arg0: i32) -> i32 {
    %c0_i32 = arith.constant 0 : i32
    %c0_i32_0 = arith.constant 0 : i32
    return %c0_i32 : i32
  }
  func.func @transform_4(%arg0: i32) -> (i32, i32) {
    %c0_i32 = arith.constant 0 : i32
    %c0_i32_0 = arith.constant 0 : i32
    %c0_i32_1 = arith.constant 0 : i32
    return %c0_i32, %c0_i32_0 : i32, i32
  }
  func.func @transform_5(%arg0: i32) -> (i32, i32) {
    %c0_i32 = arith.constant 0 : i32
    %c0_i32_0 = arith.constant 0 : i32
    %c0_i32_1 = arith.constant 0 : i32
    return %c0_i32, %c0_i32_0 : i32, i32
  }
  func.func @transform_6(%arg0: i32) -> (i32, i32) {
    %c0_i32 = arith.constant 0 : i32
    %c0_i32_0 = arith.constant 0 : i32
    return %arg0, %c0_i32 : i32, i32
  }
}

</mosaic_0001>

<llo_original>
// kernel: tpu_custom_call.1
$region0: #{tpu_custom_call.1}
  #allocation0 [shape = 'u32[]', space=smem, size = 0x4, offset = 0x4, fixed_abs, tag = 'smem constant byte address 0x4 - core index']
  #allocation1 [shape = 'u32[144,128]{1,0:T(1,128)}', space=vmem, size = 0x12000, scoped, tag = 'internal scratch']
  #allocation2 [shape = 'f32[1]{0:T(128)S(6)}', space=smem, size = 0x200, scoped, tag = 'scoped memory for tpu_custom_call.1']
  %s0 = inlined_call_operand.hbm [shape: f32[8,32], index: 0, kind: input, shape index: {}]
  %s1 = inlined_call_operand.hbm [shape: bf16[32,512], index: 1, kind: input, shape index: {}]
  %s2 = inlined_call_operand.vmem [shape: f32[1,512], index: 2, kind: input, shape index: {}]
  %s3 = inlined_call_operand.<no memory space> [shape: f32[1], index: 3, kind: input, shape index: {}]
  %s4 = inlined_call_operand.hbm [shape: bf16[512,128], index: 4, kind: input, shape index: {}]
  %s5 = inlined_call_operand.vmem [shape: f32[1,128], index: 5, kind: input, shape index: {}]
  %s6 = inlined_call_operand.hbm [shape: f32[8,128], index: 6, kind: output, shape index: {}]
  %s7 = sld [smem:[#allocation0]]
  $region46: #{tpu_custom_call.1} parent=0
    _
  %s9 = ssub.s32 1, %s7
  %s10 = scalar_select 0, %s9, %s7
  %11 = sst [smem:[#allocation2]] %s3
  $region1: #{tpu_custom_call.1} parent=0
    #allocation3 [shape = 'u8[4096]{0}', space=vmem, size = 0x1000, scoped, tag = 'input window, operand 0, single buffered']
    #allocation4 [shape = 's32[1]{0}', space=sflag, size = 0x4, scoped, tag = 'scoped memory for tpu_custom_call.1']
    #allocation5 [shape = 's32[1]{0}', space=sflag, size = 0x4, scoped, tag = 'scoped memory for tpu_custom_call.1']
    #allocation6 [shape = 'u8[32768]{0}', space=vmem, size = 0x8000, scoped, tag = 'input window, operand 1, single buffered']
    #allocation7 [shape = 's32[1]{0}', space=sflag, size = 0x4, scoped, tag = 'scoped memory for tpu_custom_call.1']
    #allocation8 [shape = 'u8[131072]{0}', space=vmem, size = 0x20000, scoped, tag = 'input window, operand 4, single buffered']
    #allocation9 [shape = 'u8[4096]{0}', space=vmem, size = 0x1000, scoped, tag = 'output window, operand 0, single buffered']
    %12 = vsyncpa [#allocation4], 0
    %13 = vsyncpa [#allocation7], 0
    %14 = vsyncpa [#allocation5], 0
    // Predicated region
    $region2: #{tpu_custom_call.1} parent=1 // pred_check
      _
    $region3: #{tpu_custom_call.1} parent=1 // pred_check_branch
      %16 = sbr.rel (0) target = $region5
    $region4: #{tpu_custom_call.1} parent=1 // pred_region
      %s18 = ssub.s32 128, 128
      %19 = vsyncadd [#allocation4], %s18
      %s21 = sshll.u32 [#allocation3], 4
      %s22 = int_to_ptr.vmem [resolvable:$true] %s21
      %24 = dma.hbm_to_vmem [thread:$0]  %s0, 128, %s22, [#allocation4]
    $region5: #{tpu_custom_call.1} parent=1 // pred_fallthru
      _
    // Predicated region
    $region6: #{tpu_custom_call.1} parent=1 // pred_check
      _
    $region7: #{tpu_custom_call.1} parent=1 // pred_check_branch
      %26 = sbr.rel (0) target = $region9
    $region8: #{tpu_custom_call.1} parent=1 // pred_region
      %s28 = ssub.s32 1024, 1024
      %29 = vsyncadd [#allocation7], %s28
      %s30 = sshll.u32 [#allocation6], 4
      %s31 = int_to_ptr.vmem [resolvable:$true] %s30
      %36 = dma.hbm_to_vmem [thread:$0]  %s1, 1024, %s31, [#allocation7], 256, 256, 16
    $region9: #{tpu_custom_call.1} parent=1 // pred_fallthru
      _
    // Predicated region
    $region10: #{tpu_custom_call.1} parent=1 // pred_check
      _
    $region11: #{tpu_custom_call.1} parent=1 // pred_check_branch
      %38 = sbr.rel (0) target = $region13
    $region12: #{tpu_custom_call.1} parent=1 // pred_region
      _
    $region13: #{tpu_custom_call.1} parent=1 // pred_fallthru
      _
    // Predicated region
    $region14: #{tpu_custom_call.1} parent=1 // pred_check
      _
    $region15: #{tpu_custom_call.1} parent=1 // pred_check_branch
      %40 = sbr.rel (0) target = $region17
    $region16: #{tpu_custom_call.1} parent=1 // pred_region
      _
    $region17: #{tpu_custom_call.1} parent=1 // pred_fallthru
      _
    // Predicated region
    $region18: #{tpu_custom_call.1} parent=1 // pred_check
      _
    $region19: #{tpu_custom_call.1} parent=1 // pred_check_branch
      %42 = sbr.rel (0) target = $region21
    $region20: #{tpu_custom_call.1} parent=1 // pred_region
      %s44 = ssub.s32 4096, 4096
      %45 = vsyncadd [#allocation7], %s44
      %s46 = sshll.u32 [#allocation8], 4
      %s47 = int_to_ptr.vmem [resolvable:$true] %s46
      %52 = dma.hbm_to_vmem [thread:$0]  %s4, 4096, %s47, [#allocation7], 64, 64, 4
    $region21: #{tpu_custom_call.1} parent=1 // pred_fallthru
      _
    // Predicated region
    $region22: #{tpu_custom_call.1} parent=1 // pred_check
      _
    $region23: #{tpu_custom_call.1} parent=1 // pred_check_branch
      %54 = sbr.rel (0) target = $region25
    $region24: #{tpu_custom_call.1} parent=1 // pred_region
      _
    $region25: #{tpu_custom_call.1} parent=1 // pred_fallthru
      _
    // Predicated region
    $region26: #{tpu_custom_call.1} parent=1 // pred_check
      _
    $region27: #{tpu_custom_call.1} parent=1 // pred_check_branch
      %56 = sbr.rel (0) target = $region29
    $region28: #{tpu_custom_call.1} parent=1 // pred_region
      %57 = dma.done [#allocation4], 128
    $region29: #{tpu_custom_call.1} parent=1 // pred_fallthru
      _
    // Predicated region
    $region30: #{tpu_custom_call.1} parent=1 // pred_check
      _
    $region31: #{tpu_custom_call.1} parent=1 // pred_check_branch
      %59 = sbr.rel (0) target = $region33
    $region32: #{tpu_custom_call.1} parent=1 // pred_region
      %60 = dma.done [#allocation7], 1024
    $region33: #{tpu_custom_call.1} parent=1 // pred_fallthru
      _
    // Predicated region
    $region34: #{tpu_custom_call.1} parent=1 // pred_check
      _
    $region35: #{tpu_custom_call.1} parent=1 // pred_check_branch
      %62 = sbr.rel (0) target = $region37
    $region36: #{tpu_custom_call.1} parent=1 // pred_region
      %63 = dma.done [#allocation7], 4096
    $region37: #{tpu_custom_call.1} parent=1 // pred_fallthru
      _
    %v65 = vld [vmem:[#allocation3] sm:$0xff]
    %v66 = vpack.c.bf16 %v65, %v65
    %v67 = vld [vmem:[#allocation6] sm:$0xff]
    %v68 = vld [vmem:[#allocation6 + $0x8] sm:$0xff]
    %v69 = vld [vmem:[#allocation6 + $0x10] sm:$0xff]
    %v70 = vld [vmem:[#allocation6 + $0x18] sm:$0xff]
    %v71 = vld [vmem:[#allocation6 + $0x20] sm:$0xff]
    %v72 = vld [vmem:[#allocation6 + $0x28] sm:$0xff]
    %v73 = vld [vmem:[#allocation6 + $0x30] sm:$0xff]
    %v74 = vld [vmem:[#allocation6 + $0x38] sm:$0xff]
    %v75 = vld [vmem:[%s2] sm:$0xf]
    %v77 = vlaneseq
    %v78 = vshrl.u32 %v77, 7
    %v79 = vsub.s32 0, %v78
    %v80 = vrot.slane %v75, %v79
    %v81 = vlaneseq
    %v82 = vshrl.u32 %v81, 7
    %v83 = vsub.s32 1, %v82
    %v84 = vrot.slane %v75, %v83
    %v85 = vlaneseq
    %v86 = vshrl.u32 %v85, 7
    %v87 = vsub.s32 2, %v86
    %v88 = vrot.slane %v75, %v87
    %v89 = vlaneseq
    %v90 = vshrl.u32 %v89, 7
    %v91 = vsub.s32 3, %v90
    %v92 = vrot.slane %v75, %v91
    %v105 = vunpack.c.l.b16 %v67
    %v106 = vunpack.c.h.b16 %v67
    %v107 = vunpack.c.l.b16 %v68
    %v108 = vunpack.c.h.b16 %v68
    %v109 = vunpack.c.l.b16 %v69
    %v110 = vunpack.c.h.b16 %v69
    %v111 = vunpack.c.l.b16 %v70
    %v112 = vunpack.c.h.b16 %v70
    %v113 = vunpack.c.l.b16 %v71
    %v114 = vunpack.c.h.b16 %v71
    %v115 = vunpack.c.l.b16 %v72
    %v116 = vunpack.c.h.b16 %v72
    %v117 = vunpack.c.l.b16 %v73
    %v118 = vunpack.c.h.b16 %v73
    %v119 = vunpack.c.l.b16 %v74
    %v120 = vunpack.c.h.b16 %v74
    %v121 = vpack.c.b16 %v109, %v105
    %v122 = vpack.c.b16 %v110, %v106
    %v123 = vpack.c.b16 %v111, %v107
    %v124 = vpack.c.b16 %v112, %v108
    %v125 = vpack.c.b16 %v117, %v113
    %v126 = vpack.c.b16 %v118, %v114
    %v127 = vpack.c.b16 %v119, %v115
    %v128 = vpack.c.b16 %v120, %v116
    %vm137 = vcmask 261120
    %v139 = vsel %vm137, %v66, 0
    %141 = vmatprep.subr.bf16.mxu0 0
    %142 = vmatpush1.bf16.msra.mxu0 0
    %143 = vmatprep.subr.bf16.mxu0 0
    %144 = vmatpush1.bf16.msra.mxu0 0
    %145 = vmatprep.subr.bf16.mxu0 0
    %146 = vmatpush1.bf16.msra.mxu0 0
    %147 = vmatprep.subr.bf16.mxu0 0
    %148 = vmatpush1.bf16.msra.mxu0 0
    %149 = vmatprep.subr.bf16.mxu0 0
    %150 = vmatpush1.bf16.msra.mxu0 0
    %151 = vmatprep.subr.bf16.mxu0 0
    %152 = vmatpush1.bf16.msra.mxu0 0
    %153 = vmatprep.subr.bf16.mxu0 %v126
    %154 = vmatpush1.bf16.msra.mxu0 %v125
    %155 = vmatprep.subr.bf16.mxu0 %v122
    %156 = vmatpush1.bf16.msra.mxu0 %v121
    %157 = vmatprep.subr.bf16.mxu0 0
    %158 = vmatpush2.bf16.msra.mxu0 0
    %159 = vmatprep.subr.bf16.mxu0 0
    %160 = vmatpush2.bf16.msra.mxu0 0
    %161 = vmatprep.subr.bf16.mxu0 0
    %162 = vmatpush2.bf16.msra.mxu0 0
    %163 = vmatprep.subr.bf16.mxu0 0
    %164 = vmatpush2.bf16.msra.mxu0 0
    %165 = vmatprep.subr.bf16.mxu0 0
    %166 = vmatpush2.bf16.msra.mxu0 0
    %167 = vmatprep.subr.bf16.mxu0 0
    %168 = vmatpush2.bf16.msra.mxu0 0
    %169 = vmatprep.subr.bf16.mxu0 0
    %170 = vmatpush2.bf16.msra.mxu0 0
    %171 = vmatprep.subr.bf16.mxu0 0
    %172 = vmatpush2.bf16.msra.mxu0 0
    %173 = vmatprep.mubr.bf16.mxu0 0
    %174 = vmatmul.mubr.bf16.gmra.mxu0 %v139
    %v175 = vpop.f32.mrf.mxu0
    %v176 = vadd.f32 %v80, %v175
    %v177 = vpop.f32.mrf.mxu0
    %v178 = vadd.f32 %v84, %v177
    %v179 = vpop.f32.mrf.mxu0
    %v180 = vpop.f32.mrf.mxu0
    %181 = vdwg.mxu0
    %182 = vmatprep.subr.bf16.mxu0 0
    %183 = vmatpush1.bf16.msra.mxu0 0
    %184 = vmatprep.subr.bf16.mxu0 0
    %185 = vmatpush1.bf16.msra.mxu0 0
    %186 = vmatprep.subr.bf16.mxu0 0
    %187 = vmatpush1.bf16.msra.mxu0 0
    %188 = vmatprep.subr.bf16.mxu0 0
    %189 = vmatpush1.bf16.msra.mxu0 0
    %190 = vmatprep.subr.bf16.mxu0 0
    %191 = vmatpush1.bf16.msra.mxu0 0
    %192 = vmatprep.subr.bf16.mxu0 0
    %193 = vmatpush1.bf16.msra.mxu0 0
    %194 = vmatprep.subr.bf16.mxu0 %v128
    %195 = vmatpush1.bf16.msra.mxu0 %v127
    %196 = vmatprep.subr.bf16.mxu0 %v124
    %197 = vmatpush1.bf16.msra.mxu0 %v123
    %198 = vmatprep.subr.bf16.mxu0 0
    %199 = vmatpush2.bf16.msra.mxu0 0
    %200 = vmatprep.subr.bf16.mxu0 0
    %201 = vmatpush2.bf16.msra.mxu0 0
    %202 = vmatprep.subr.bf16.mxu0 0
    %203 = vmatpush2.bf16.msra.mxu0 0
    %204 = vmatprep.subr.bf16.mxu0 0
    %205 = vmatpush2.bf16.msra.mxu0 0
    %206 = vmatprep.subr.bf16.mxu0 0
    %207 = vmatpush2.bf16.msra.mxu0 0
    %208 = vmatprep.subr.bf16.mxu0 0
    %209 = vmatpush2.bf16.msra.mxu0 0
    %210 = vmatprep.subr.bf16.mxu0 0
    %211 = vmatpush2.bf16.msra.mxu0 0
    %212 = vmatprep.subr.bf16.mxu0 0
    %213 = vmatpush2.bf16.msra.mxu0 0
    %214 = vmatprep.mubr.bf16.mxu0 0
    %215 = vmatmul.mubr.bf16.gmra.mxu0 %v139
    %v216 = vpop.f32.mrf.mxu0
    %v217 = vadd.f32 %v88, %v216
    %v218 = vpop.f32.mrf.mxu0
    %v219 = vadd.f32 %v92, %v218
    %v220 = vpop.f32.mrf.mxu0
    %v221 = vpop.f32.mrf.mxu0
    %222 = vdwg.mxu0
    %s223 = sld [smem:[#allocation2]]
    %vm224 = vcmp.ge.f32.partialorder %v176, 0.0
    %vm225 = vcmp.ge.f32.partialorder %v178, 0.0
    %vm226 = vcmp.ge.f32.partialorder %v217, 0.0
    %vm227 = vcmp.ge.f32.partialorder %v219, 0.0
    %v228 = vstv %s223
    %v229 = vmul.f32 %v228, %v176
    %v230 = vmul.f32 %v228, %v178
    %v231 = vmul.f32 %v228, %v217
    %v232 = vmul.f32 %v228, %v219
    %v233 = vsel %vm224, %v176, %v229
    %v234 = vsel %vm225, %v178, %v230
    %v235 = vsel %vm226, %v217, %v231
    %v236 = vsel %vm227, %v219, %v232
    %v237 = vpack.c.bf16 %v233, %v233
    %v238 = vpack.c.bf16 %v234, %v234
    %v239 = vpack.c.bf16 %v235, %v235
    %v240 = vpack.c.bf16 %v236, %v236
    %v241 = vld [vmem:[#allocation8] sm:$0xf]
    %v242 = vld [vmem:[#allocation8 + $0x4] sm:$0xf]
    %v243 = vld [vmem:[#allocation8 + $0x8] sm:$0xf]
    %v244 = vld [vmem:[#allocation8 + $0xc] sm:$0xf]
    %v245 = vld [vmem:[#allocation8 + $0x10] sm:$0xf]
    %v246 = vld [vmem:[#allocation8 + $0x14] sm:$0xf]
    %v247 = vld [vmem:[#allocation8 + $0x18] sm:$0xf]
    %v248 = vld [vmem:[#allocation8 + $0x1c] sm:$0xf]
    %v249 = vld [vmem:[#allocation8 + $0x20] sm:$0xf]
    %v250 = vld [vmem:[#allocation8 + $0x24] sm:$0xf]
    %v251 = vld [vmem:[#allocation8 + $0x28] sm:$0xf]
    %v252 = vld [vmem:[#allocation8 + $0x2c] sm:$0xf]
    %v253 = vld [vmem:[#allocation8 + $0x30] sm:$0xf]
    %v254 = vld [vmem:[#allocation8 + $0x34] sm:$0xf]
    %v255 = vld [vmem:[#allocation8 + $0x38] sm:$0xf]
    %v256 = vld [vmem:[#allocation8 + $0x3c] sm:$0xf]
    %v257 = vld [vmem:[#allocation8 + $0x40] sm:$0xf]
    %v258 = vld [vmem:[#allocation8 + $0x44] sm:$0xf]
    %v259 = vld [vmem:[#allocation8 + $0x48] sm:$0xf]
    %v260 = vld [vmem:[#allocation8 + $0x4c] sm:$0xf]
    %v261 = vld [vmem:[#allocation8 + $0x50] sm:$0xf]
    %v262 = vld [vmem:[#allocation8 + $0x54] sm:$0xf]
    %v263 = vld [vmem:[#allocation8 + $0x58] sm:$0xf]
    %v264 = vld [vmem:[#allocation8 + $0x5c] sm:$0xf]
    %v265 = vld [vmem:[#allocation8 + $0x60] sm:$0xf]
    %v266 = vld [vmem:[#allocation8 + $0x64] sm:$0xf]
    %v267 = vld [vmem:[#allocation8 + $0x68] sm:$0xf]
    %v268 = vld [vmem:[#allocation8 + $0x6c] sm:$0xf]
    %v269 = vld [vmem:[#allocation8 + $0x70] sm:$0xf]
    %v270 = vld [vmem:[#allocation8 + $0x74] sm:$0xf]
    %v271 = vld [vmem:[#allocation8 + $0x78] sm:$0xf]
    %v272 = vld [vmem:[#allocation8 + $0x7c] sm:$0xf]
    %v273 = vld [vmem:[#allocation8 + $0x80] sm:$0xf]
    %v274 = vld [vmem:[#allocation8 + $0x84] sm:$0xf]
    %v275 = vld [vmem:[#allocation8 + $0x88] sm:$0xf]
    %v276 = vld [vmem:[#allocation8 + $0x8c] sm:$0xf]
    %v277 = vld [vmem:[#allocation8 + $0x90] sm:$0xf]
    %v278 = vld [vmem:[#allocation8 + $0x94] sm:$0xf]
    %v279 = vld [vmem:[#allocation8 + $0x98] sm:$0xf]
    %v280 = vld [vmem:[#allocation8 + $0x9c] sm:$0xf]
    %v281 = vld [vmem:[#allocation8 + $0xa0] sm:$0xf]
    %v282 = vld [vmem:[#allocation8 + $0xa4] sm:$0xf]
    %v283 = vld [vmem:[#allocation8 + $0xa8] sm:$0xf]
    %v284 = vld [vmem:[#allocation8 + $0xac] sm:$0xf]
    %v285 = vld [vmem:[#allocation8 + $0xb0] sm:$0xf]
    %v286 = vld [vmem:[#allocation8 + $0xb4] sm:$0xf]
    %v287 = vld [vmem:[#allocation8 + $0xb8] sm:$0xf]
    %v288 = vld [vmem:[#allocation8 + $0xbc] sm:$0xf]
    %v289 = vld [vmem:[#allocation8 + $0xc0] sm:$0xf]
    %v290 = vld [vmem:[#allocation8 + $0xc4] sm:$0xf]
    %v291 = vld [vmem:[#allocation8 + $0xc8] sm:$0xf]
    %v292 = vld [vmem:[#allocation8 + $0xcc] sm:$0xf]
    %v293 = vld [vmem:[#allocation8 + $0xd0] sm:$0xf]
    %v294 = vld [vmem:[#allocation8 + $0xd4] sm:$0xf]
    %v295 = vld [vmem:[#allocation8 + $0xd8] sm:$0xf]
    %v296 = vld [vmem:[#allocation8 + $0xdc] sm:$0xf]
    %v297 = vld [vmem:[#allocation8 + $0xe0] sm:$0xf]
    %v298 = vld [vmem:[#allocation8 + $0xe4] sm:$0xf]
    %v299 = vld [vmem:[#allocation8 + $0xe8] sm:$0xf]
    %v300 = vld [vmem:[#allocation8 + $0xec] sm:$0xf]
    %v301 = vld [vmem:[#allocation8 + $0xf0] sm:$0xf]
    %v302 = vld [vmem:[#allocation8 + $0xf4] sm:$0xf]
    %v303 = vld [vmem:[#allocation8 + $0xf8] sm:$0xf]
    %v304 = vld [vmem:[#allocation8 + $0xfc] sm:$0xf]
    %v305 = vld [vmem:[%s5] sm:$0x1]
    %v307 = vlaneseq
    %v308 = vshrl.u32 %v307, 7
    %v309 = vsub.s32 0, %v308
    %v310 = vrot.slane %v305, %v309
    %v376 = vunpack.c.l.b16 %v241
    %v377 = vunpack.c.l.b16 %v242
    %v378 = vunpack.c.l.b16 %v243
    %v379 = vunpack.c.l.b16 %v244
    %v380 = vunpack.c.l.b16 %v245
    %v381 = vunpack.c.l.b16 %v246
    %v382 = vunpack.c.l.b16 %v247
    %v383 = vunpack.c.l.b16 %v248
    %v384 = vunpack.c.l.b16 %v249
    %v385 = vunpack.c.l.b16 %v250
    %v386 = vunpack.c.l.b16 %v251
    %v387 = vunpack.c.l.b16 %v252
    %v388 = vunpack.c.l.b16 %v253
    %v389 = vunpack.c.l.b16 %v254
    %v390 = vunpack.c.l.b16 %v255
    %v391 = vunpack.c.l.b16 %v256
    %v392 = vunpack.c.l.b16 %v257
    %v393 = vunpack.c.l.b16 %v258
    %v394 = vunpack.c.l.b16 %v259
    %v395 = vunpack.c.l.b16 %v260
    %v396 = vunpack.c.l.b16 %v261
    %v397 = vunpack.c.l.b16 %v262
    %v398 = vunpack.c.l.b16 %v263
    %v399 = vunpack.c.l.b16 %v264
    %v400 = vunpack.c.l.b16 %v265
    %v401 = vunpack.c.l.b16 %v266
    %v402 = vunpack.c.l.b16 %v267
    %v403 = vunpack.c.l.b16 %v268
    %v404 = vunpack.c.l.b16 %v269
    %v405 = vunpack.c.l.b16 %v270
    %v406 = vunpack.c.l.b16 %v271
    %v407 = vunpack.c.l.b16 %v272
    %v408 = vunpack.c.l.b16 %v273
    %v409 = vunpack.c.l.b16 %v274
    %v410 = vunpack.c.l.b16 %v275
    %v411 = vunpack.c.l.b16 %v276
    %v412 = vunpack.c.l.b16 %v277
    %v413 = vunpack.c.l.b16 %v278
    %v414 = vunpack.c.l.b16 %v279
    %v415 = vunpack.c.l.b16 %v280
    %v416 = vunpack.c.l.b16 %v281
    %v417 = vunpack.c.l.b16 %v282
    %v418 = vunpack.c.l.b16 %v283
    %v419 = vunpack.c.l.b16 %v284
    %v420 = vunpack.c.l.b16 %v285
    %v421 = vunpack.c.l.b16 %v286
    %v422 = vunpack.c.l.b16 %v287
    %v423 = vunpack.c.l.b16 %v288
    %v424 = vunpack.c.l.b16 %v289
    %v425 = vunpack.c.l.b16 %v290
    %v426 = vunpack.c.l.b16 %v291
    %v427 = vunpack.c.l.b16 %v292
    %v428 = vunpack.c.l.b16 %v293
    %v429 = vunpack.c.l.b16 %v294
    %v430 = vunpack.c.l.b16 %v295
    %v431 = vunpack.c.l.b16 %v296
    %v432 = vunpack.c.l.b16 %v297
    %v433 = vunpack.c.l.b16 %v298
    %v434 = vunpack.c.l.b16 %v299
    %v435 = vunpack.c.l.b16 %v300
    %v436 = vunpack.c.l.b16 %v301
    %v437 = vunpack.c.l.b16 %v302
    %v438 = vunpack.c.l.b16 %v303
    %v439 = vunpack.c.l.b16 %v304
    %v440 = vpack.c.b16 %v377, %v376
    %v441 = vpack.c.b16 %v379, %v378
    %v442 = vpack.c.b16 %v381, %v380
    %v443 = vpack.c.b16 %v383, %v382
    %v444 = vpack.c.b16 %v385, %v384
    %v445 = vpack.c.b16 %v387, %v386
    %v446 = vpack.c.b16 %v389, %v388
    %v447 = vpack.c.b16 %v391, %v390
    %v448 = vpack.c.b16 %v393, %v392
    %v449 = vpack.c.b16 %v395, %v394
    %v450 = vpack.c.b16 %v397, %v396
    %v451 = vpack.c.b16 %v399, %v398
    %v452 = vpack.c.b16 %v401, %v400
    %v453 = vpack.c.b16 %v403, %v402
    %v454 = vpack.c.b16 %v405, %v404
    %v455 = vpack.c.b16 %v407, %v406
    %v456 = vpack.c.b16 %v409, %v408
    %v457 = vpack.c.b16 %v411, %v410
    %v458 = vpack.c.b16 %v413, %v412
    %v459 = vpack.c.b16 %v415, %v414
    %v460 = vpack.c.b16 %v417, %v416
    %v461 = vpack.c.b16 %v419, %v418
    %v462 = vpack.c.b16 %v421, %v420
    %v463 = vpack.c.b16 %v423, %v422
    %v464 = vpack.c.b16 %v425, %v424
    %v465 = vpack.c.b16 %v427, %v426
    %v466 = vpack.c.b16 %v429, %v428
    %v467 = vpack.c.b16 %v431, %v430
    %v468 = vpack.c.b16 %v433, %v432
    %v469 = vpack.c.b16 %v435, %v434
    %v470 = vpack.c.b16 %v437, %v436
    %v471 = vpack.c.b16 %v439, %v438
    %504 = vmatprep.subr.bf16.mxu0 0
    %505 = vmatpush1.bf16.msra.mxu0 %v447
    %506 = vmatprep.subr.bf16.mxu0 0
    %507 = vmatpush1.bf16.msra.mxu0 %v446
    %508 = vmatprep.subr.bf16.mxu0 0
    %509 = vmatpush1.bf16.msra.mxu0 %v445
    %510 = vmatprep.subr.bf16.mxu0 0
    %511 = vmatpush1.bf16.msra.mxu0 %v444
    %512 = vmatprep.subr.bf16.mxu0 0
    %513 = vmatpush1.bf16.msra.mxu0 %v443
    %514 = vmatprep.subr.bf16.mxu0 0
    %515 = vmatpush1.bf16.msra.mxu0 %v442
    %516 = vmatprep.subr.bf16.mxu0 0
    %517 = vmatpush1.bf16.msra.mxu0 %v441
    %518 = vmatprep.subr.bf16.mxu0 0
    %519 = vmatpush1.bf16.msra.mxu0 %v440
    %520 = vmatprep.subr.bf16.mxu0 0
    %521 = vmatpush2.bf16.msra.mxu0 %v455
    %522 = vmatprep.subr.bf16.mxu0 0
    %523 = vmatpush2.bf16.msra.mxu0 %v454
    %524 = vmatprep.subr.bf16.mxu0 0
    %525 = vmatpush2.bf16.msra.mxu0 %v453
    %526 = vmatprep.subr.bf16.mxu0 0
    %527 = vmatpush2.bf16.msra.mxu0 %v452
    %528 = vmatprep.subr.bf16.mxu0 0
    %529 = vmatpush2.bf16.msra.mxu0 %v451
    %530 = vmatprep.subr.bf16.mxu0 0
    %531 = vmatpush2.bf16.msra.mxu0 %v450
    %532 = vmatprep.subr.bf16.mxu0 0
    %533 = vmatpush2.bf16.msra.mxu0 %v449
    %534 = vmatprep.subr.bf16.mxu0 0
    %535 = vmatpush2.bf16.msra.mxu0 %v448
    %536 = vmatprep.mubr.bf16.mxu0 %v238
    %537 = vmatmul.mubr.bf16.gmra.mxu0 %v237
    %v538 = vpop.f32.mrf.mxu0
    %v539 = vadd.f32 %v310, %v538
    %v540 = vpop.f32.mrf.mxu0
    %v541 = vpop.f32.mrf.mxu0
    %v542 = vpop.f32.mrf.mxu0
    %543 = vdwg.mxu0
    %544 = vmatprep.subr.bf16.mxu0 0
    %545 = vmatpush1.bf16.msra.mxu0 %v463
    %546 = vmatprep.subr.bf16.mxu0 0
    %547 = vmatpush1.bf16.msra.mxu0 %v462
    %548 = vmatprep.subr.bf16.mxu0 0
    %549 = vmatpush1.bf16.msra.mxu0 %v461
    %550 = vmatprep.subr.bf16.mxu0 0
    %551 = vmatpush1.bf16.msra.mxu0 %v460
    %552 = vmatprep.subr.bf16.mxu0 0
    %553 = vmatpush1.bf16.msra.mxu0 %v459
    %554 = vmatprep.subr.bf16.mxu0 0
    %555 = vmatpush1.bf16.msra.mxu0 %v458
    %556 = vmatprep.subr.bf16.mxu0 0
    %557 = vmatpush1.bf16.msra.mxu0 %v457
    %558 = vmatprep.subr.bf16.mxu0 0
    %559 = vmatpush1.bf16.msra.mxu0 %v456
    %560 = vmatprep.subr.bf16.mxu0 0
    %561 = vmatpush2.bf16.msra.mxu0 %v471
    %562 = vmatprep.subr.bf16.mxu0 0
    %563 = vmatpush2.bf16.msra.mxu0 %v470
    %564 = vmatprep.subr.bf16.mxu0 0
    %565 = vmatpush2.bf16.msra.mxu0 %v469
    %566 = vmatprep.subr.bf16.mxu0 0
    %567 = vmatpush2.bf16.msra.mxu0 %v468
    %568 = vmatprep.subr.bf16.mxu0 0
    %569 = vmatpush2.bf16.msra.mxu0 %v467
    %570 = vmatprep.subr.bf16.mxu0 0
    %571 = vmatpush2.bf16.msra.mxu0 %v466
    %572 = vmatprep.subr.bf16.mxu0 0
    %573 = vmatpush2.bf16.msra.mxu0 %v465
    %574 = vmatprep.subr.bf16.mxu0 0
    %575 = vmatpush2.bf16.msra.mxu0 %v464
    %576 = vmatprep.mubr.bf16.mxu0 %v240
    %577 = vmatmul.mubr.bf16.gmra.mxu0 %v239
    %v578 = vpop.f32.mrf.mxu0
    %v579 = vadd.f32 %v539, %v578
    %v580 = vpop.f32.mrf.mxu0
    %v581 = vpop.f32.mrf.mxu0
    %v582 = vpop.f32.mrf.mxu0
    %583 = vdwg.mxu0
    %584 = vst [vmem:[#allocation9] sm:$0xff] %v579
    // Predicated region
    $region38: #{tpu_custom_call.1} parent=1 // pred_check
      _
    $region39: #{tpu_custom_call.1} parent=1 // pred_check_branch
      %586 = sbr.rel (0) target = $region41
    $region40: #{tpu_custom_call.1} parent=1 // pred_region
      %s588 = ssub.s32 128, 128
      %589 = vsyncadd [#allocation5], %s588
      %s591 = sshll.u32 [#allocation9], 4
      %s592 = int_to_ptr.vmem [resolvable:$true] %s591
      %594 = dma.vmem_to_hbm [thread:$0]  %s592, 128, %s6, [#allocation5]
    $region41: #{tpu_custom_call.1} parent=1 // pred_fallthru
      _
    // Predicated region
    $region42: #{tpu_custom_call.1} parent=1 // pred_check
      _
    $region43: #{tpu_custom_call.1} parent=1 // pred_check_branch
      %596 = sbr.rel (0) target = $region45
    $region44: #{tpu_custom_call.1} parent=1 // pred_region
      %597 = dma.done [#allocation5], 128
    $region45: #{tpu_custom_call.1} parent=1 // pred_fallthru
      _
    %598 = vsyncpa [#allocation4], 1
    %599 = vsyncpa [#allocation7], 1
    %600 = vsyncpa [#allocation5], 1

</llo_original>
